<compile_context>
chip_gen: v7x
topology: tpu7x:2x2x1
jax: 0.10.0
libtpu: 0.0.40
codegen_flags: <defaults>
</compile_context>

<pallas_src>
import functools

import jax
import jax.numpy as jnp
from jax.experimental import pallas as pl
from jax.experimental.pallas import tpu as pltpu


def _conv3x3_kernel(x_ref, w_ref, o_ref, taps_ref, *, H, W, NB, Cin, cin_pad,
                    compute_dtype):
    # x_ref:    (NB, Cin, H*W)        NB batch elements, spatial on lanes
    # w_ref:    (Cout, 9*cin_pad)     tap-major flattened weight (K-padded)
    # o_ref:    (NB, Cout, H*W)       lane-dense output block (NCHW layout)
    # taps_ref: (9*cin_pad, NB*H*W)   VMEM scratch: stacked rolled/masked taps
    HW = H * W

    # Zero the stacked-tap operand so the K-padding rows (rows Cin..cin_pad of
    # each tap) contribute exactly zero.  Uninitialized VMEM may hold NaN/Inf
    # and 0 * NaN = NaN.  Unconditional -> correct under megacore sharding too.
    taps_ref[...] = jnp.zeros_like(taps_ref)

    # Boundary predicates, hoisted out of the tap loop (implicit zero padding;
    # they also kill the roll wrap-around lanes).  Row predicates need no
    # div/mod; the single `% W` strength-reduces to an AND for power-of-two W.
    lane = jax.lax.broadcasted_iota(jnp.int32, (1, HW), 1)
    ok_up = lane >= W                    # row h-1 exists
    ok_down = lane < (H - 1) * W         # row h+1 exists
    col = lane % W
    ok_left = col >= 1                   # col w-1 exists
    ok_right = col < (W - 1)             # col w+1 exists

    def tap_mask(kh, kw):
        m = None
        for pred, need in ((ok_up, kh < 0), (ok_down, kh > 0),
                           (ok_left, kw < 0), (ok_right, kw > 0)):
            if need:
                m = pred if m is None else (m & pred)
        return m

    # Build the (9*cin_pad, NB*HW) stacked operand: one rolled+masked copy of
    # the input per tap; batch elements laid side by side on lanes.
    for b in range(NB):
        xb = x_ref[b]                                    # (Cin, HW)
        if compute_dtype is not None:
            xb = xb.astype(compute_dtype)                # early cast (v6e/v7x)
        for t in range(9):
            kh, kw = t // 3 - 1, t % 3 - 1
            d = kh * W + kw                              # flattened tap offset
            xs = xb if d == 0 else pltpu.roll(xb, shift=(-d) % HW, axis=1)
            m = tap_mask(kh, kw)
            if m is not None:
                xs = jnp.where(m, xs, jnp.zeros((), xs.dtype))
            # Rows of each tap start at an 8-sublane-aligned offset.
            taps_ref[t * cin_pad:t * cin_pad + Cin,
                     b * HW:(b + 1) * HW] = xs

    # Single fused MXU matmul over all 9 taps and all NB images:
    #   (Cout, 9*cin_pad) @ (9*cin_pad, NB*HW) -> (Cout, NB*HW), f32 acc.
    out = jnp.dot(w_ref[...], taps_ref[...], preferred_element_type=jnp.float32)

    # Lane-dense stores (HW-aligned slices) back to the NCHW-layout output.
    for b in range(NB):
        o_ref[b] = out[:, b * HW:(b + 1) * HW].astype(o_ref.dtype)


def _pick_batch_tile(N, HW, cin, cout, cin_pad, itemsize,
                     vmem_budget=16 * 1024 * 1024, lane_budget=4096):
    """Largest divisor of N whose per-step footprint fits the budgets."""
    best = 1
    for nb in range(1, N + 1):
        if N % nb:
            continue
        lanes = nb * HW
        # double-buffered in + out blocks, plus the stacked-tap scratch
        vmem = itemsize * (2 * nb * (cin + cout) * HW + 9 * cin_pad * lanes)
        if lanes <= lane_budget and vmem <= vmem_budget:
            best = nb
    return best


def conv3x3_pallas(x_nchw, weight_oihw, *, compute_dtype=None, batch_tile=None):
    """3x3 conv, stride 1, padding 1, no bias.  Matches torch.nn.Conv2d.

    compute_dtype: set to jnp.bfloat16 on v6e/v7x for higher MXU throughput
    (f32 accumulation kept); default None matches PyTorch f32 numerics.
    """
    N, Cin, H, W = x_nchw.shape
    Cout = weight_oihw.shape[0]
    HW = H * W
    cin_pad = ((Cin + 7) // 8) * 8          # 8-sublane granule per tap
    K = 9 * cin_pad

    # Free row-major collapse: spatial -> lanes.
    x_flat = x_nchw.reshape(N, Cin, HW)

    # Tiny weight: reorder once to tap-major and zero-pad Cin up to cin_pad so
    # it matches the stacked-tap scratch layout -> single (Cout, K) operand.
    w = jnp.transpose(weight_oihw, (0, 2, 3, 1))          # (Cout, 3, 3, Cin)
    if cin_pad != Cin:
        w = jnp.pad(w, ((0, 0), (0, 0), (0, 0), (0, cin_pad - Cin)))
    w_flat = w.reshape(Cout, K)
    if compute_dtype is not None:
        w_flat = w_flat.astype(compute_dtype)

    if batch_tile is None:
        batch_tile = _pick_batch_tile(N, HW, Cin, Cout, cin_pad,
                                      jnp.dtype(x_nchw.dtype).itemsize)
    NB = batch_tile
    assert N % NB == 0, "batch_tile must divide N"
    steps = N // NB

    scratch_dtype = compute_dtype if compute_dtype is not None else x_nchw.dtype

    kernel = functools.partial(_conv3x3_kernel, H=H, W=W, NB=NB, Cin=Cin,
                               cin_pad=cin_pad, compute_dtype=compute_dtype)

    out_flat = pl.pallas_call(
        kernel,
        out_shape=jax.ShapeDtypeStruct((N, Cout, HW), x_nchw.dtype),
        grid_spec=pltpu.PrefetchScalarGridSpec(
            num_scalar_prefetch=0,
            grid=(steps,),
            in_specs=[
                pl.BlockSpec((NB, Cin, HW), lambda i: (i, 0, 0)),
                pl.BlockSpec((Cout, K), lambda i: (0, 0)),
            ],
            out_specs=pl.BlockSpec((NB, Cout, HW), lambda i: (i, 0, 0)),
            scratch_shapes=[pltpu.VMEM((K, NB * HW), scratch_dtype)],
        ),
        compiler_params=pltpu.CompilerParams(
            # Tiny per-step work -> "arbitrary" (don't split ~1 MFLOP across
            # v7x's two TensorCores); flip to "parallel" once there are many
            # fat steps so megacore sharding actually pays off.
            dimension_semantics=("parallel",) if steps > 4 else ("arbitrary",),
            vmem_limit_bytes=32 * 1024 * 1024,
        ),
    )(x_flat, w_flat)

    # Free row-major expand back to NCHW (no transpose needed).
    return out_flat.reshape(N, Cout, H, W)


if __name__ == "__main__":
    key = jax.random.PRNGKey(0)
    k_x, k_w = jax.random.split(key)

    N, Cin, Cout, H, W = 2, 4, 8, 16, 16

    x = jax.random.normal(k_x, (N, Cin, H, W), dtype=jnp.float32)
    # Deterministic weight init (uniform, same OIHW shape as nn.Conv2d weight).
    fan_in = Cin * 3 * 3
    bound = 1.0 / (fan_in ** 0.5)
    weight = jax.random.uniform(k_w, (Cout, Cin, 3, 3),
                                minval=-bound, maxval=bound,
                                dtype=jnp.float32)

    out = conv3x3_pallas(x, weight)
    out = jax.block_until_ready(out)

    # Cross-check against XLA's conv to make sure semantics match.
    ref = jax.lax.conv_general_dilated(
        x, weight, window_strides=(1, 1), padding=((1, 1), (1, 1)),
        dimension_numbers=("NCHW", "OIHW", "NCHW"))
    assert out.shape == (N, Cout, H, W)
    assert jnp.allclose(out, ref, atol=1e-4, rtol=1e-4)

    print("KERNEL_OK")
</pallas_src>

<mosaic_0001>
module attributes {stable_mosaic.version = 11 : i64} {
  func.func @_conv3x3_kernel(%arg0: i32, %arg1: memref<2x4x256xf32, #tpu.memory_space<vmem>>, %arg2: memref<8x72xf32, #tpu.memory_space<vmem>>, %arg3: memref<2x8x256xf32, #tpu.memory_space<vmem>>, %arg4: memref<72x512xf32, #tpu.memory_space<vmem>>) attributes {dimension_semantics = [#tpu.dimension_semantics<arbitrary>], iteration_bounds = array<i64: 1>, scalar_prefetch = 0 : i64, scratch_operands = 1 : i64, tpu.core_type = #tpu.core_type<tc>, window_params = [{transform_indices = @transform_0, window_bounds = array<i64: 2, 4, 256>}, {pipeline_mode = #tpu.pipeline_mode<synchronous>, transform_indices = @transform_1, window_bounds = array<i64: 8, 72>}, {transform_indices = @transform_2, window_bounds = array<i64: 2, 8, 256>}]} {
    %cst = arith.constant 0.000000e+00 : f32
    %0 = vector.broadcast %cst : f32 to vector<72x512xf32>
    %c0 = arith.constant 0 : index
    %c0_0 = arith.constant 0 : index
    %1 = vector.load %arg4[%c0, %c0_0] : memref<72x512xf32, #tpu.memory_space<vmem>>, vector<72x512xf32>
    tpu.vector_store %arg4[%c0, %c0_0], %0 {strides = array<i32>} : memref<72x512xf32, #tpu.memory_space<vmem>>, vector<72x512xf32>,
    %2 = tpu.iota {dimensions = array<i32: 1>} : vector<1x256xi32>
    %c16_i32 = arith.constant 16 : i32
    %3 = vector.broadcast %c16_i32 : i32 to vector<1x256xi32>
    %4 = arith.cmpi sge, %2, %3 : vector<1x256xi32>
    %c240_i32 = arith.constant 240 : i32
    %5 = vector.broadcast %c240_i32 : i32 to vector<1x256xi32>
    %6 = arith.cmpi slt, %2, %5 : vector<1x256xi32>
    %c16_i32_1 = arith.constant 16 : i32
    %c0_i32 = arith.constant 0 : i32
    %7 = arith.cmpi eq, %c16_i32_1, %c0_i32 : i32
    %c1_i32 = arith.constant 1 : i32
    %8 = arith.select %7, %c1_i32, %c16_i32_1 : i32
    %9 = vector.broadcast %8 : i32 to vector<1x256xi32>
    %10 = arith.remsi %2, %9 : vector<1x256xi32>
    %c0_i32_2 = arith.constant 0 : i32
    %11 = vector.broadcast %c0_i32_2 : i32 to vector<1x256xi32>
    %12 = arith.cmpi ne, %10, %11 : vector<1x256xi32>
    %c0_i32_3 = arith.constant 0 : i32
    %13 = vector.broadcast %c0_i32_3 : i32 to vector<1x256xi32>
    %14 = arith.cmpi slt, %10, %13 : vector<1x256xi32>
    %c0_i32_4 = arith.constant 0 : i32
    %15 = arith.cmpi slt, %8, %c0_i32_4 : i32
    %16 = vector.broadcast %15 : i1 to vector<1x256xi1>
    %17 = vector.broadcast %16 : vector<1x256xi1> to vector<1x256xi1>
    %18 = arith.xori %14, %17 : vector<1x256xi1>
    %19 = arith.andi %18, %12 : vector<1x256xi1>
    %20 = vector.broadcast %8 : i32 to vector<1x256xi32>
    %21 = arith.addi %10, %20 : vector<1x256xi32>
    %22 = arith.select %19, %21, %10 : vector<1x256xi1>, vector<1x256xi32>
    %c1_i32_5 = arith.constant 1 : i32
    %23 = vector.broadcast %c1_i32_5 : i32 to vector<1x256xi32>
    %24 = arith.cmpi sge, %22, %23 : vector<1x256xi32>
    %c15_i32 = arith.constant 15 : i32
    %25 = vector.broadcast %c15_i32 : i32 to vector<1x256xi32>
    %26 = arith.cmpi slt, %22, %25 : vector<1x256xi32>
    %c0_6 = arith.constant 0 : index
    %c0_7 = arith.constant 0 : index
    %c0_8 = arith.constant 0 : index
    %27 = vector.load %arg1[%c0_6, %c0_7, %c0_8] : memref<2x4x256xf32, #tpu.memory_space<vmem>>, vector<1x4x256xf32>
    %28 = vector.shape_cast %27 : vector<1x4x256xf32> to vector<4x256xf32>
    %c17_i32 = arith.constant 17 : i32
    %29 = tpu.dynamic_rotate %28 by %c17_i32 dim 1 : vector<4x256xf32>, i32 -> vector<4x256xf32>
    %30 = arith.andi %4, %24 : vector<1x256xi1>
    %cst_9 = arith.constant 0.000000e+00 : f32
    %31 = vector.shape_cast %30 : vector<1x256xi1> to vector<1x256xi1>
    %32 = vector.broadcast %31 : vector<1x256xi1> to vector<4x256xi1>
    %33 = vector.broadcast %cst_9 : f32 to vector<4x256xf32>
    %34 = arith.select %32, %29, %33 : vector<4x256xi1>, vector<4x256xf32>
    %c0_10 = arith.constant 0 : index
    %c0_11 = arith.constant 0 : index
    %35 = vector.load %arg4[%c0_10, %c0_11] : memref<72x512xf32, #tpu.memory_space<vmem>>, vector<4x256xf32>
    tpu.vector_store %arg4[%c0_10, %c0_11], %34 {strides = array<i32>} : memref<72x512xf32, #tpu.memory_space<vmem>>, vector<4x256xf32>,
    %c16_i32_12 = arith.constant 16 : i32
    %36 = tpu.dynamic_rotate %28 by %c16_i32_12 dim 1 : vector<4x256xf32>, i32 -> vector<4x256xf32>
    %cst_13 = arith.constant 0.000000e+00 : f32
    %37 = vector.shape_cast %4 : vector<1x256xi1> to vector<1x256xi1>
    %38 = vector.broadcast %37 : vector<1x256xi1> to vector<4x256xi1>
    %39 = vector.broadcast %cst_13 : f32 to vector<4x256xf32>
    %40 = arith.select %38, %36, %39 : vector<4x256xi1>, vector<4x256xf32>
    %c8 = arith.constant 8 : index
    %c0_14 = arith.constant 0 : index
    %41 = vector.load %arg4[%c8, %c0_14] : memref<72x512xf32, #tpu.memory_space<vmem>>, vector<4x256xf32>
    tpu.vector_store %arg4[%c8, %c0_14], %40 {strides = array<i32>} : memref<72x512xf32, #tpu.memory_space<vmem>>, vector<4x256xf32>,
    %c15_i32_15 = arith.constant 15 : i32
    %42 = tpu.dynamic_rotate %28 by %c15_i32_15 dim 1 : vector<4x256xf32>, i32 -> vector<4x256xf32>
    %43 = arith.andi %4, %26 : vector<1x256xi1>
    %cst_16 = arith.constant 0.000000e+00 : f32
    %44 = vector.shape_cast %43 : vector<1x256xi1> to vector<1x256xi1>
    %45 = vector.broadcast %44 : vector<1x256xi1> to vector<4x256xi1>
    %46 = vector.broadcast %cst_16 : f32 to vector<4x256xf32>
    %47 = arith.select %45, %42, %46 : vector<4x256xi1>, vector<4x256xf32>
    %c16 = arith.constant 16 : index
    %c0_17 = arith.constant 0 : index
    %48 = vector.load %arg4[%c16, %c0_17] : memref<72x512xf32, #tpu.memory_space<vmem>>, vector<4x256xf32>
    tpu.vector_store %arg4[%c16, %c0_17], %47 {strides = array<i32>} : memref<72x512xf32, #tpu.memory_space<vmem>>, vector<4x256xf32>,
    %c1_i32_18 = arith.constant 1 : i32
    %49 = tpu.dynamic_rotate %28 by %c1_i32_18 dim 1 : vector<4x256xf32>, i32 -> vector<4x256xf32>
    %cst_19 = arith.constant 0.000000e+00 : f32
    %50 = vector.shape_cast %24 : vector<1x256xi1> to vector<1x256xi1>
    %51 = vector.broadcast %50 : vector<1x256xi1> to vector<4x256xi1>
    %52 = vector.broadcast %cst_19 : f32 to vector<4x256xf32>
    %53 = arith.select %51, %49, %52 : vector<4x256xi1>, vector<4x256xf32>
    %c24 = arith.constant 24 : index
    %c0_20 = arith.constant 0 : index
    %54 = vector.load %arg4[%c24, %c0_20] : memref<72x512xf32, #tpu.memory_space<vmem>>, vector<4x256xf32>
    tpu.vector_store %arg4[%c24, %c0_20], %53 {strides = array<i32>} : memref<72x512xf32, #tpu.memory_space<vmem>>, vector<4x256xf32>,
    %c32 = arith.constant 32 : index
    %c0_21 = arith.constant 0 : index
    %55 = vector.load %arg4[%c32, %c0_21] : memref<72x512xf32, #tpu.memory_space<vmem>>, vector<4x256xf32>
    tpu.vector_store %arg4[%c32, %c0_21], %28 {strides = array<i32>} : memref<72x512xf32, #tpu.memory_space<vmem>>, vector<4x256xf32>,
    %c255_i32 = arith.constant 255 : i32
    %56 = tpu.dynamic_rotate %28 by %c255_i32 dim 1 : vector<4x256xf32>, i32 -> vector<4x256xf32>
    %cst_22 = arith.constant 0.000000e+00 : f32
    %57 = vector.shape_cast %26 : vector<1x256xi1> to vector<1x256xi1>
    %58 = vector.broadcast %57 : vector<1x256xi1> to vector<4x256xi1>
    %59 = vector.broadcast %cst_22 : f32 to vector<4x256xf32>
    %60 = arith.select %58, %56, %59 : vector<4x256xi1>, vector<4x256xf32>
    %c40 = arith.constant 40 : index
    %c0_23 = arith.constant 0 : index
    %61 = vector.load %arg4[%c40, %c0_23] : memref<72x512xf32, #tpu.memory_space<vmem>>, vector<4x256xf32>
    tpu.vector_store %arg4[%c40, %c0_23], %60 {strides = array<i32>} : memref<72x512xf32, #tpu.memory_space<vmem>>, vector<4x256xf32>,
    %c241_i32 = arith.constant 241 : i32
    %62 = tpu.dynamic_rotate %28 by %c241_i32 dim 1 : vector<4x256xf32>, i32 -> vector<4x256xf32>
    %63 = arith.andi %6, %24 : vector<1x256xi1>
    %cst_24 = arith.constant 0.000000e+00 : f32
    %64 = vector.shape_cast %63 : vector<1x256xi1> to vector<1x256xi1>
    %65 = vector.broadcast %64 : vector<1x256xi1> to vector<4x256xi1>
    %66 = vector.broadcast %cst_24 : f32 to vector<4x256xf32>
    %67 = arith.select %65, %62, %66 : vector<4x256xi1>, vector<4x256xf32>
    %c48 = arith.constant 48 : index
    %c0_25 = arith.constant 0 : index
    %68 = vector.load %arg4[%c48, %c0_25] : memref<72x512xf32, #tpu.memory_space<vmem>>, vector<4x256xf32>
    tpu.vector_store %arg4[%c48, %c0_25], %67 {strides = array<i32>} : memref<72x512xf32, #tpu.memory_space<vmem>>, vector<4x256xf32>,
    %c240_i32_26 = arith.constant 240 : i32
    %69 = tpu.dynamic_rotate %28 by %c240_i32_26 dim 1 : vector<4x256xf32>, i32 -> vector<4x256xf32>
    %cst_27 = arith.constant 0.000000e+00 : f32
    %70 = vector.shape_cast %6 : vector<1x256xi1> to vector<1x256xi1>
    %71 = vector.broadcast %70 : vector<1x256xi1> to vector<4x256xi1>
    %72 = vector.broadcast %cst_27 : f32 to vector<4x256xf32>
    %73 = arith.select %71, %69, %72 : vector<4x256xi1>, vector<4x256xf32>
    %c56 = arith.constant 56 : index
    %c0_28 = arith.constant 0 : index
    %74 = vector.load %arg4[%c56, %c0_28] : memref<72x512xf32, #tpu.memory_space<vmem>>, vector<4x256xf32>
    tpu.vector_store %arg4[%c56, %c0_28], %73 {strides = array<i32>} : memref<72x512xf32, #tpu.memory_space<vmem>>, vector<4x256xf32>,
    %c239_i32 = arith.constant 239 : i32
    %75 = tpu.dynamic_rotate %28 by %c239_i32 dim 1 : vector<4x256xf32>, i32 -> vector<4x256xf32>
    %76 = arith.andi %6, %26 : vector<1x256xi1>
    %cst_29 = arith.constant 0.000000e+00 : f32
    %77 = vector.shape_cast %76 : vector<1x256xi1> to vector<1x256xi1>
    %78 = vector.broadcast %77 : vector<1x256xi1> to vector<4x256xi1>
    %79 = vector.broadcast %cst_29 : f32 to vector<4x256xf32>
    %80 = arith.select %78, %75, %79 : vector<4x256xi1>, vector<4x256xf32>
    %c64 = arith.constant 64 : index
    %c0_30 = arith.constant 0 : index
    %81 = vector.load %arg4[%c64, %c0_30] : memref<72x512xf32, #tpu.memory_space<vmem>>, vector<4x256xf32>
    tpu.vector_store %arg4[%c64, %c0_30], %80 {strides = array<i32>} : memref<72x512xf32, #tpu.memory_space<vmem>>, vector<4x256xf32>,
    %c1 = arith.constant 1 : index
    %c0_31 = arith.constant 0 : index
    %c0_32 = arith.constant 0 : index
    %82 = vector.load %arg1[%c1, %c0_31, %c0_32] : memref<2x4x256xf32, #tpu.memory_space<vmem>>, vector<1x4x256xf32>
    %83 = vector.shape_cast %82 : vector<1x4x256xf32> to vector<4x256xf32>
    %c17_i32_33 = arith.constant 17 : i32
    %84 = tpu.dynamic_rotate %83 by %c17_i32_33 dim 1 : vector<4x256xf32>, i32 -> vector<4x256xf32>
    %85 = arith.andi %4, %24 : vector<1x256xi1>
    %cst_34 = arith.constant 0.000000e+00 : f32
    %86 = vector.shape_cast %85 : vector<1x256xi1> to vector<1x256xi1>
    %87 = vector.broadcast %86 : vector<1x256xi1> to vector<4x256xi1>
    %88 = vector.broadcast %cst_34 : f32 to vector<4x256xf32>
    %89 = arith.select %87, %84, %88 : vector<4x256xi1>, vector<4x256xf32>
    %c0_35 = arith.constant 0 : index
    %c256 = arith.constant 256 : index
    %90 = vector.load %arg4[%c0_35, %c256] : memref<72x512xf32, #tpu.memory_space<vmem>>, vector<4x256xf32>
    tpu.vector_store %arg4[%c0_35, %c256], %89 {strides = array<i32>} : memref<72x512xf32, #tpu.memory_space<vmem>>, vector<4x256xf32>,
    %c16_i32_36 = arith.constant 16 : i32
    %91 = tpu.dynamic_rotate %83 by %c16_i32_36 dim 1 : vector<4x256xf32>, i32 -> vector<4x256xf32>
    %cst_37 = arith.constant 0.000000e+00 : f32
    %92 = vector.shape_cast %4 : vector<1x256xi1> to vector<1x256xi1>
    %93 = vector.broadcast %92 : vector<1x256xi1> to vector<4x256xi1>
    %94 = vector.broadcast %cst_37 : f32 to vector<4x256xf32>
    %95 = arith.select %93, %91, %94 : vector<4x256xi1>, vector<4x256xf32>
    %c8_38 = arith.constant 8 : index
    %c256_39 = arith.constant 256 : index
    %96 = vector.load %arg4[%c8_38, %c256_39] : memref<72x512xf32, #tpu.memory_space<vmem>>, vector<4x256xf32>
    tpu.vector_store %arg4[%c8_38, %c256_39], %95 {strides = array<i32>} : memref<72x512xf32, #tpu.memory_space<vmem>>, vector<4x256xf32>,
    %c15_i32_40 = arith.constant 15 : i32
    %97 = tpu.dynamic_rotate %83 by %c15_i32_40 dim 1 : vector<4x256xf32>, i32 -> vector<4x256xf32>
    %98 = arith.andi %4, %26 : vector<1x256xi1>
    %cst_41 = arith.constant 0.000000e+00 : f32
    %99 = vector.shape_cast %98 : vector<1x256xi1> to vector<1x256xi1>
    %100 = vector.broadcast %99 : vector<1x256xi1> to vector<4x256xi1>
    %101 = vector.broadcast %cst_41 : f32 to vector<4x256xf32>
    %102 = arith.select %100, %97, %101 : vector<4x256xi1>, vector<4x256xf32>
    %c16_42 = arith.constant 16 : index
    %c256_43 = arith.constant 256 : index
    %103 = vector.load %arg4[%c16_42, %c256_43] : memref<72x512xf32, #tpu.memory_space<vmem>>, vector<4x256xf32>
    tpu.vector_store %arg4[%c16_42, %c256_43], %102 {strides = array<i32>} : memref<72x512xf32, #tpu.memory_space<vmem>>, vector<4x256xf32>,
    %c1_i32_44 = arith.constant 1 : i32
    %104 = tpu.dynamic_rotate %83 by %c1_i32_44 dim 1 : vector<4x256xf32>, i32 -> vector<4x256xf32>
    %cst_45 = arith.constant 0.000000e+00 : f32
    %105 = vector.shape_cast %24 : vector<1x256xi1> to vector<1x256xi1>
    %106 = vector.broadcast %105 : vector<1x256xi1> to vector<4x256xi1>
    %107 = vector.broadcast %cst_45 : f32 to vector<4x256xf32>
    %108 = arith.select %106, %104, %107 : vector<4x256xi1>, vector<4x256xf32>
    %c24_46 = arith.constant 24 : index
    %c256_47 = arith.constant 256 : index
    %109 = vector.load %arg4[%c24_46, %c256_47] : memref<72x512xf32, #tpu.memory_space<vmem>>, vector<4x256xf32>
    tpu.vector_store %arg4[%c24_46, %c256_47], %108 {strides = array<i32>} : memref<72x512xf32, #tpu.memory_space<vmem>>, vector<4x256xf32>,
    %c32_48 = arith.constant 32 : index
    %c256_49 = arith.constant 256 : index
    %110 = vector.load %arg4[%c32_48, %c256_49] : memref<72x512xf32, #tpu.memory_space<vmem>>, vector<4x256xf32>
    tpu.vector_store %arg4[%c32_48, %c256_49], %83 {strides = array<i32>} : memref<72x512xf32, #tpu.memory_space<vmem>>, vector<4x256xf32>,
    %c255_i32_50 = arith.constant 255 : i32
    %111 = tpu.dynamic_rotate %83 by %c255_i32_50 dim 1 : vector<4x256xf32>, i32 -> vector<4x256xf32>
    %cst_51 = arith.constant 0.000000e+00 : f32
    %112 = vector.shape_cast %26 : vector<1x256xi1> to vector<1x256xi1>
    %113 = vector.broadcast %112 : vector<1x256xi1> to vector<4x256xi1>
    %114 = vector.broadcast %cst_51 : f32 to vector<4x256xf32>
    %115 = arith.select %113, %111, %114 : vector<4x256xi1>, vector<4x256xf32>
    %c40_52 = arith.constant 40 : index
    %c256_53 = arith.constant 256 : index
    %116 = vector.load %arg4[%c40_52, %c256_53] : memref<72x512xf32, #tpu.memory_space<vmem>>, vector<4x256xf32>
    tpu.vector_store %arg4[%c40_52, %c256_53], %115 {strides = array<i32>} : memref<72x512xf32, #tpu.memory_space<vmem>>, vector<4x256xf32>,
    %c241_i32_54 = arith.constant 241 : i32
    %117 = tpu.dynamic_rotate %83 by %c241_i32_54 dim 1 : vector<4x256xf32>, i32 -> vector<4x256xf32>
    %118 = arith.andi %6, %24 : vector<1x256xi1>
    %cst_55 = arith.constant 0.000000e+00 : f32
    %119 = vector.shape_cast %118 : vector<1x256xi1> to vector<1x256xi1>
    %120 = vector.broadcast %119 : vector<1x256xi1> to vector<4x256xi1>
    %121 = vector.broadcast %cst_55 : f32 to vector<4x256xf32>
    %122 = arith.select %120, %117, %121 : vector<4x256xi1>, vector<4x256xf32>
    %c48_56 = arith.constant 48 : index
    %c256_57 = arith.constant 256 : index
    %123 = vector.load %arg4[%c48_56, %c256_57] : memref<72x512xf32, #tpu.memory_space<vmem>>, vector<4x256xf32>
    tpu.vector_store %arg4[%c48_56, %c256_57], %122 {strides = array<i32>} : memref<72x512xf32, #tpu.memory_space<vmem>>, vector<4x256xf32>,
    %c240_i32_58 = arith.constant 240 : i32
    %124 = tpu.dynamic_rotate %83 by %c240_i32_58 dim 1 : vector<4x256xf32>, i32 -> vector<4x256xf32>
    %cst_59 = arith.constant 0.000000e+00 : f32
    %125 = vector.shape_cast %6 : vector<1x256xi1> to vector<1x256xi1>
    %126 = vector.broadcast %125 : vector<1x256xi1> to vector<4x256xi1>
    %127 = vector.broadcast %cst_59 : f32 to vector<4x256xf32>
    %128 = arith.select %126, %124, %127 : vector<4x256xi1>, vector<4x256xf32>
    %c56_60 = arith.constant 56 : index
    %c256_61 = arith.constant 256 : index
    %129 = vector.load %arg4[%c56_60, %c256_61] : memref<72x512xf32, #tpu.memory_space<vmem>>, vector<4x256xf32>
    tpu.vector_store %arg4[%c56_60, %c256_61], %128 {strides = array<i32>} : memref<72x512xf32, #tpu.memory_space<vmem>>, vector<4x256xf32>,
    %c239_i32_62 = arith.constant 239 : i32
    %130 = tpu.dynamic_rotate %83 by %c239_i32_62 dim 1 : vector<4x256xf32>, i32 -> vector<4x256xf32>
    %131 = arith.andi %6, %26 : vector<1x256xi1>
    %cst_63 = arith.constant 0.000000e+00 : f32
    %132 = vector.shape_cast %131 : vector<1x256xi1> to vector<1x256xi1>
    %133 = vector.broadcast %132 : vector<1x256xi1> to vector<4x256xi1>
    %134 = vector.broadcast %cst_63 : f32 to vector<4x256xf32>
    %135 = arith.select %133, %130, %134 : vector<4x256xi1>, vector<4x256xf32>
    %c64_64 = arith.constant 64 : index
    %c256_65 = arith.constant 256 : index
    %136 = vector.load %arg4[%c64_64, %c256_65] : memref<72x512xf32, #tpu.memory_space<vmem>>, vector<4x256xf32>
    tpu.vector_store %arg4[%c64_64, %c256_65], %135 {strides = array<i32>} : memref<72x512xf32, #tpu.memory_space<vmem>>, vector<4x256xf32>,
    %c0_66 = arith.constant 0 : index
    %c0_67 = arith.constant 0 : index
    %137 = vector.load %arg2[%c0_66, %c0_67] : memref<8x72xf32, #tpu.memory_space<vmem>>, vector<8x72xf32>
    %c0_68 = arith.constant 0 : index
    %c0_69 = arith.constant 0 : index
    %138 = vector.load %arg4[%c0_68, %c0_69] : memref<72x512xf32, #tpu.memory_space<vmem>>, vector<72x512xf32>
    %cst_70 = arith.constant dense<0.000000e+00> : vector<8x512xf32>
    %139 = tpu.matmul %137, %138, %cst_70 {dimension_numbers = #tpu.dot_dimension_numbers<[1], [0], [0], [1], [0, 0, 1, 1], [], []>} : vector<8x72xf32>, vector<72x512xf32>, vector<8x512xf32> -> vector<8x512xf32>
    %140 = vector.extract_strided_slice %139 {offsets = [0, 0], sizes = [8, 256], strides = [1, 1]} : vector<8x512xf32> to vector<8x256xf32>
    %c0_71 = arith.constant 0 : index
    %c0_72 = arith.constant 0 : index
    %c0_73 = arith.constant 0 : index
    %141 = vector.load %arg3[%c0_71, %c0_72, %c0_73] : memref<2x8x256xf32, #tpu.memory_space<vmem>>, vector<1x8x256xf32>
    %142 = vector.shape_cast %141 : vector<1x8x256xf32> to vector<8x256xf32>
    %143 = vector.shape_cast %140 : vector<8x256xf32> to vector<1x8x256xf32>
    tpu.vector_store %arg3[%c0_71, %c0_72, %c0_73], %143 {strides = array<i32>} : memref<2x8x256xf32, #tpu.memory_space<vmem>>, vector<1x8x256xf32>,
    %144 = vector.extract_strided_slice %139 {offsets = [0, 256], sizes = [8, 256], strides = [1, 1]} : vector<8x512xf32> to vector<8x256xf32>
    %c1_74 = arith.constant 1 : index
    %c0_75 = arith.constant 0 : index
    %c0_76 = arith.constant 0 : index
    %145 = vector.load %arg3[%c1_74, %c0_75, %c0_76] : memref<2x8x256xf32, #tpu.memory_space<vmem>>, vector<1x8x256xf32>
    %146 = vector.shape_cast %145 : vector<1x8x256xf32> to vector<8x256xf32>
    %147 = vector.shape_cast %144 : vector<8x256xf32> to vector<1x8x256xf32>
    tpu.vector_store %arg3[%c1_74, %c0_75, %c0_76], %147 {strides = array<i32>} : memref<2x8x256xf32, #tpu.memory_space<vmem>>, vector<1x8x256xf32>,
    return
  }
  func.func @transform_0(%arg0: i32) -> (i32, i32, i32) {
    %c0_i32 = arith.constant 0 : i32
    %c0_i32_0 = arith.constant 0 : i32
    %c0_i32_1 = arith.constant 0 : i32
    return %arg0, %c0_i32, %c0_i32_0 : i32, i32, i32
  }
  func.func @transform_1(%arg0: i32) -> (i32, i32) {
    %c0_i32 = arith.constant 0 : i32
    %c0_i32_0 = arith.constant 0 : i32
    %c0_i32_1 = arith.constant 0 : i32
    return %c0_i32, %c0_i32_0 : i32, i32
  }
  func.func @transform_2(%arg0: i32) -> (i32, i32, i32) {
    %c0_i32 = arith.constant 0 : i32
    %c0_i32_0 = arith.constant 0 : i32
    %c0_i32_1 = arith.constant 0 : i32
    return %arg0, %c0_i32, %c0_i32_0 : i32, i32, i32
  }
}

</mosaic_0001>

<llo_original>
// kernel: tpu_custom_call.1
$region0: #{tpu_custom_call.1}
  #allocation0 [shape = 'u32[]', space=smem, size = 0x4, offset = 0x4, fixed_abs, tag = 'smem constant byte address 0x4 - core index']
  #allocation1 [shape = 'u32[144,128]{1,0:T(1,128)}', space=vmem, size = 0x12000, scoped, tag = 'internal scratch']
  #allocation2 [shape = 'f32[72,512]{1,0:T(8,128)}', space=vmem, size = 0x24000, scoped, tag = 'scratch operand']
  %s0 = inlined_call_operand.hbm [shape: f32[2,4,256], index: 0, kind: input, shape index: {}]
  %s1 = inlined_call_operand.hbm [shape: f32[8,72], index: 1, kind: input, shape index: {}]
  %s2 = inlined_call_operand.hbm [shape: f32[2,8,256], index: 2, kind: output, shape index: {}]
  %s3 = sld [smem:[#allocation0]]
  $region26: #{tpu_custom_call.1} parent=0
    _
  %s5 = ssub.s32 1, %s3
  %s6 = scalar_select 0, %s5, %s3
  $region1: #{tpu_custom_call.1} parent=0
    #allocation3 [shape = 'u8[8192]{0}', space=vmem, size = 0x2000, scoped, tag = 'input window, operand 0, single buffered']
    #allocation4 [shape = 's32[1]{0}', space=sflag, size = 0x4, scoped, tag = 'scoped memory for tpu_custom_call.1']
    #allocation5 [shape = 's32[1]{0}', space=sflag, size = 0x4, scoped, tag = 'scoped memory for tpu_custom_call.1']
    #allocation6 [shape = 'u8[4096]{0}', space=vmem, size = 0x1000, scoped, tag = 'input window, operand 1, single buffered']
    #allocation7 [shape = 's32[1]{0}', space=sflag, size = 0x4, scoped, tag = 'scoped memory for tpu_custom_call.1']
    #allocation8 [shape = 'u8[16384]{0}', space=vmem, size = 0x4000, scoped, tag = 'output window, operand 0, single buffered']
    %7 = vsyncpa [#allocation4], 0
    %8 = vsyncpa [#allocation7], 0
    %9 = vsyncpa [#allocation5], 0
    // Predicated region
    $region2: #{tpu_custom_call.1} parent=1 // pred_check
      _
    $region3: #{tpu_custom_call.1} parent=1 // pred_check_branch
      %11 = sbr.rel (0) target = $region5
    $region4: #{tpu_custom_call.1} parent=1 // pred_region
      %s13 = ssub.s32 256, 256
      %14 = vsyncadd [#allocation4], %s13
      %s15 = sshll.u32 [#allocation3], 4
      %s16 = int_to_ptr.vmem [resolvable:$true] %s15
      %21 = dma.hbm_to_vmem [thread:$0]  %s0, 256, %s16, [#allocation4], 128, 128, 8
    $region5: #{tpu_custom_call.1} parent=1 // pred_fallthru
      _
    // Predicated region
    $region6: #{tpu_custom_call.1} parent=1 // pred_check
      _
    $region7: #{tpu_custom_call.1} parent=1 // pred_check_branch
      %23 = sbr.rel (0) target = $region9
    $region8: #{tpu_custom_call.1} parent=1 // pred_region
      %s25 = ssub.s32 128, 128
      %26 = vsyncadd [#allocation7], %s25
      %s28 = sshll.u32 [#allocation6], 4
      %s29 = int_to_ptr.vmem [resolvable:$true] %s28
      %31 = dma.hbm_to_vmem [thread:$0]  %s1, 128, %s29, [#allocation7]
    $region9: #{tpu_custom_call.1} parent=1 // pred_fallthru
      _
    // Predicated region
    $region10: #{tpu_custom_call.1} parent=1 // pred_check
      _
    $region11: #{tpu_custom_call.1} parent=1 // pred_check_branch
      %33 = sbr.rel (0) target = $region13
    $region12: #{tpu_custom_call.1} parent=1 // pred_region
      %34 = dma.done [#allocation4], 256
    $region13: #{tpu_custom_call.1} parent=1 // pred_fallthru
      _
    // Predicated region
    $region14: #{tpu_custom_call.1} parent=1 // pred_check
      _
    $region15: #{tpu_custom_call.1} parent=1 // pred_check_branch
      %36 = sbr.rel (0) target = $region17
    $region16: #{tpu_custom_call.1} parent=1 // pred_region
      %37 = dma.done [#allocation7], 128
    $region17: #{tpu_custom_call.1} parent=1 // pred_fallthru
      _
    %38 = vst [vmem:[#allocation2] sm:$0xff] 0.0
    %39 = vst [vmem:[#allocation2 + $0x8] sm:$0xff] 0.0
    %40 = vst [vmem:[#allocation2 + $0x10] sm:$0xff] 0.0
    %41 = vst [vmem:[#allocation2 + $0x18] sm:$0xff] 0.0
    %42 = vst [vmem:[#allocation2 + $0x20] sm:$0xff] 0.0
    %43 = vst [vmem:[#allocation2 + $0x28] sm:$0xff] 0.0
    %44 = vst [vmem:[#allocation2 + $0x30] sm:$0xff] 0.0
    %45 = vst [vmem:[#allocation2 + $0x38] sm:$0xff] 0.0
    %46 = vst [vmem:[#allocation2 + $0x40] sm:$0xff] 0.0
    %47 = vst [vmem:[#allocation2 + $0x48] sm:$0xff] 0.0
    %48 = vst [vmem:[#allocation2 + $0x50] sm:$0xff] 0.0
    %49 = vst [vmem:[#allocation2 + $0x58] sm:$0xff] 0.0
    %50 = vst [vmem:[#allocation2 + $0x60] sm:$0xff] 0.0
    %51 = vst [vmem:[#allocation2 + $0x68] sm:$0xff] 0.0
    %52 = vst [vmem:[#allocation2 + $0x70] sm:$0xff] 0.0
    %53 = vst [vmem:[#allocation2 + $0x78] sm:$0xff] 0.0
    %54 = vst [vmem:[#allocation2 + $0x80] sm:$0xff] 0.0
    %55 = vst [vmem:[#allocation2 + $0x88] sm:$0xff] 0.0
    %56 = vst [vmem:[#allocation2 + $0x90] sm:$0xff] 0.0
    %57 = vst [vmem:[#allocation2 + $0x98] sm:$0xff] 0.0
    %58 = vst [vmem:[#allocation2 + $0xa0] sm:$0xff] 0.0
    %59 = vst [vmem:[#allocation2 + $0xa8] sm:$0xff] 0.0
    %60 = vst [vmem:[#allocation2 + $0xb0] sm:$0xff] 0.0
    %61 = vst [vmem:[#allocation2 + $0xb8] sm:$0xff] 0.0
    %62 = vst [vmem:[#allocation2 + $0xc0] sm:$0xff] 0.0
    %63 = vst [vmem:[#allocation2 + $0xc8] sm:$0xff] 0.0
    %64 = vst [vmem:[#allocation2 + $0xd0] sm:$0xff] 0.0
    %65 = vst [vmem:[#allocation2 + $0xd8] sm:$0xff] 0.0
    %66 = vst [vmem:[#allocation2 + $0xe0] sm:$0xff] 0.0
    %67 = vst [vmem:[#allocation2 + $0xe8] sm:$0xff] 0.0
    %68 = vst [vmem:[#allocation2 + $0xf0] sm:$0xff] 0.0
    %69 = vst [vmem:[#allocation2 + $0xf8] sm:$0xff] 0.0
    %70 = vst [vmem:[#allocation2 + $0x100] sm:$0xff] 0.0
    %71 = vst [vmem:[#allocation2 + $0x108] sm:$0xff] 0.0
    %72 = vst [vmem:[#allocation2 + $0x110] sm:$0xff] 0.0
    %73 = vst [vmem:[#allocation2 + $0x118] sm:$0xff] 0.0
    %v74 = vlaneseq
    %v75 = vand.u32 %v74, 127
    %v76 = vadd.s32 %v75, 128
    %vm77 = vcmp.ge.s32.totalorder %v75, 16
    %vm78 = vcmp.ge.s32.totalorder %v76, 16
    %vm79 = vcmp.lt.s32.totalorder %v75, 240
    %vm80 = vcmp.lt.s32.totalorder %v76, 240
    %vm81 = vcmp.lt.s32.totalorder %v75, 0
    %v82 = vsub.s32 0, %v75
    %v83 = vsel %vm81, %v82, %v75
    %v84 = vshrl.u32 %v83, 4
    %v85 = vand.u32 %v83, 15
    %v86 = vsub.s32 0, %v85
    %v87 = vsel %vm81, %v86, %v85
    %vm88 = vcmp.lt.s32.totalorder %v76, 0
    %v89 = vsub.s32 0, %v76
    %v90 = vsel %vm88, %v89, %v76
    %v91 = vshrl.u32 %v90, 4
    %v92 = vand.u32 %v90, 15
    %v93 = vsub.s32 0, %v92
    %v94 = vsel %vm88, %v93, %v92
    %vm95 = vcmp.ne.s32.totalorder %v87, 0
    %vm96 = vcmp.ne.s32.totalorder %v94, 0
    %vm97 = vcmp.lt.s32.totalorder %v87, 0
    %vm98 = vcmp.lt.s32.totalorder %v94, 0
    %vm99 = vmand %vm97, %vm95
    %vm100 = vmand %vm98, %vm96
    %v101 = vadd.s32 %v87, 16
    %v102 = vadd.s32 %v94, 16
    %v103 = vsel %vm99, %v101, %v87
    %v104 = vsel %vm100, %v102, %v94
    %vm105 = vcmp.ge.s32.totalorder %v103, 1
    %vm106 = vcmp.ge.s32.totalorder %v104, 1
    %vm107 = vcmp.lt.s32.totalorder %v103, 15
    %vm108 = vcmp.lt.s32.totalorder %v104, 15
    %v109 = vld [vmem:[#allocation3] sm:$0xff]
    %v111 = vcombine.high %v109, %v109
    %113 = vrot.lane.b32.xlu0 %v109, 17
    %v114 = vpop.permute.xlu0 %113
    %115 = vrot.lane.b32.xlu0 %v111, 17
    %v116 = vpop.permute.xlu0 %115
    %vm117 = vcmp.lt.s32.totalorder %v75, 17
    %v118 = vsel %vm117, %v114, %v116
    %v119 = vsel %vm117, %v116, %v114
    %vm120 = vmand %vm77, %vm105
    %vm121 = vmand %vm78, %vm106
    %v122 = vsel %vm120, 1, 0
    %v123 = vsel %vm121, 1, 0
    %vm124 = vcmp.eq.s32.totalorder %v122, 1
    %vm125 = vcmp.eq.s32.totalorder %v123, 1
    %v126 = vsel %vm124, %v119, 0.0
    %v127 = vsel %vm125, %v118, 0.0
    %128 = vst [vmem:[#allocation2] sm:$0xf] %v126
    %129 = vst [vmem:[#allocation2 + $0x8] sm:$0xf] %v127
    %130 = vrot.lane.b32.xlu0 %v109, 16
    %v131 = vpop.permute.xlu0 %130
    %132 = vrot.lane.b32.xlu0 %v111, 16
    %v133 = vpop.permute.xlu0 %132
    %vm134 = vcmp.lt.s32.totalorder %v75, 16
    %v135 = vsel %vm134, %v131, %v133
    %v136 = vsel %vm134, %v133, %v131
    %v137 = vsel %vm77, 1, 0
    %v138 = vsel %vm78, 1, 0
    %vm139 = vcmp.eq.s32.totalorder %v137, 1
    %vm140 = vcmp.eq.s32.totalorder %v138, 1
    %v141 = vsel %vm139, %v136, 0.0
    %v142 = vsel %vm140, %v135, 0.0
    %143 = vst [vmem:[#allocation2 + $0x20] sm:$0xf] %v141
    %144 = vst [vmem:[#allocation2 + $0x28] sm:$0xf] %v142
    %145 = vrot.lane.b32.xlu0 %v109, 15
    %v146 = vpop.permute.xlu0 %145
    %147 = vrot.lane.b32.xlu0 %v111, 15
    %v148 = vpop.permute.xlu0 %147
    %vm149 = vcmp.lt.s32.totalorder %v75, 15
    %v150 = vsel %vm149, %v146, %v148
    %v151 = vsel %vm149, %v148, %v146
    %vm152 = vmand %vm77, %vm107
    %vm153 = vmand %vm78, %vm108
    %v154 = vsel %vm152, 1, 0
    %v155 = vsel %vm153, 1, 0
    %vm156 = vcmp.eq.s32.totalorder %v154, 1
    %vm157 = vcmp.eq.s32.totalorder %v155, 1
    %v158 = vsel %vm156, %v151, 0.0
    %v159 = vsel %vm157, %v150, 0.0
    %160 = vst [vmem:[#allocation2 + $0x40] sm:$0xf] %v158
    %161 = vst [vmem:[#allocation2 + $0x48] sm:$0xf] %v159
    %162 = vrot.lane.b32.xlu0 %v109, 1
    %v163 = vpop.permute.xlu0 %162
    %164 = vrot.lane.b32.xlu0 %v111, 1
    %v165 = vpop.permute.xlu0 %164
    %vm166 = vcmp.lt.s32.totalorder %v75, 1
    %v167 = vsel %vm166, %v163, %v165
    %v168 = vsel %vm166, %v165, %v163
    %v169 = vsel %vm105, 1, 0
    %v170 = vsel %vm106, 1, 0
    %vm171 = vcmp.eq.s32.totalorder %v169, 1
    %vm172 = vcmp.eq.s32.totalorder %v170, 1
    %v173 = vsel %vm171, %v168, 0.0
    %v174 = vsel %vm172, %v167, 0.0
    %175 = vst [vmem:[#allocation2 + $0x60] sm:$0xf] %v173
    %176 = vst [vmem:[#allocation2 + $0x68] sm:$0xf] %v174
    %177 = vst [vmem:[#allocation2 + $0x80] sm:$0xf] %v109
    %178 = vst [vmem:[#allocation2 + $0x88] sm:$0xf] %v111
    %179 = vrot.lane.b32.xlu0 %v109, 127
    %v180 = vpop.permute.xlu0 %179
    %181 = vrot.lane.b32.xlu0 %v111, 127
    %v182 = vpop.permute.xlu0 %181
    %vm183 = vcmp.lt.s32.totalorder %v75, 127
    %v184 = vsel %vm183, %v180, %v182
    %v185 = vsel %vm183, %v182, %v180
    %v186 = vsel %vm107, 1, 0
    %v187 = vsel %vm108, 1, 0
    %vm188 = vcmp.eq.s32.totalorder %v186, 1
    %vm189 = vcmp.eq.s32.totalorder %v187, 1
    %v190 = vsel %vm188, %v184, 0.0
    %v191 = vsel %vm189, %v185, 0.0
    %192 = vst [vmem:[#allocation2 + $0xa0] sm:$0xf] %v190
    %193 = vst [vmem:[#allocation2 + $0xa8] sm:$0xf] %v191
    %194 = vrot.lane.b32.xlu0 %v109, 113
    %v195 = vpop.permute.xlu0 %194
    %196 = vrot.lane.b32.xlu0 %v111, 113
    %v197 = vpop.permute.xlu0 %196
    %vm198 = vcmp.lt.s32.totalorder %v75, 113
    %v199 = vsel %vm198, %v195, %v197
    %v200 = vsel %vm198, %v197, %v195
    %vm201 = vmand %vm79, %vm105
    %vm202 = vmand %vm80, %vm106
    %v203 = vsel %vm201, 1, 0
    %v204 = vsel %vm202, 1, 0
    %vm205 = vcmp.eq.s32.totalorder %v203, 1
    %vm206 = vcmp.eq.s32.totalorder %v204, 1
    %v207 = vsel %vm205, %v199, 0.0
    %v208 = vsel %vm206, %v200, 0.0
    %209 = vst [vmem:[#allocation2 + $0xc0] sm:$0xf] %v207
    %210 = vst [vmem:[#allocation2 + $0xc8] sm:$0xf] %v208
    %211 = vrot.lane.b32.xlu0 %v109, 112
    %v212 = vpop.permute.xlu0 %211
    %213 = vrot.lane.b32.xlu0 %v111, 112
    %v214 = vpop.permute.xlu0 %213
    %vm215 = vcmp.lt.s32.totalorder %v75, 112
    %v216 = vsel %vm215, %v212, %v214
    %v217 = vsel %vm215, %v214, %v212
    %v218 = vsel %vm79, 1, 0
    %v219 = vsel %vm80, 1, 0
    %vm220 = vcmp.eq.s32.totalorder %v218, 1
    %vm221 = vcmp.eq.s32.totalorder %v219, 1
    %v222 = vsel %vm220, %v216, 0.0
    %v223 = vsel %vm221, %v217, 0.0
    %224 = vst [vmem:[#allocation2 + $0xe0] sm:$0xf] %v222
    %225 = vst [vmem:[#allocation2 + $0xe8] sm:$0xf] %v223
    %226 = vrot.lane.b32.xlu0 %v109, 111
    %v227 = vpop.permute.xlu0 %226
    %228 = vrot.lane.b32.xlu0 %v111, 111
    %v229 = vpop.permute.xlu0 %228
    %vm230 = vcmp.lt.s32.totalorder %v75, 111
    %v231 = vsel %vm230, %v227, %v229
    %v232 = vsel %vm230, %v229, %v227
    %vm233 = vmand %vm79, %vm107
    %vm234 = vmand %vm80, %vm108
    %v235 = vsel %vm233, 1, 0
    %v236 = vsel %vm234, 1, 0
    %vm237 = vcmp.eq.s32.totalorder %v235, 1
    %vm238 = vcmp.eq.s32.totalorder %v236, 1
    %v239 = vsel %vm237, %v231, 0.0
    %v240 = vsel %vm238, %v232, 0.0
    %241 = vst [vmem:[#allocation2 + $0x100] sm:$0xf] %v239
    %242 = vst [vmem:[#allocation2 + $0x108] sm:$0xf] %v240
    %s243 = scalar_lea.vmem [#allocation3], 8
    %v244 = vld [vmem:[%s243] sm:$0xff]
    %v246 = vcombine.high %v244, %v244
    %248 = vrot.lane.b32.xlu0 %v244, 17
    %v249 = vpop.permute.xlu0 %248
    %250 = vrot.lane.b32.xlu0 %v246, 17
    %v251 = vpop.permute.xlu0 %250
    %v252 = vsel %vm117, %v249, %v251
    %v253 = vsel %vm117, %v251, %v249
    %v254 = vsel %vm124, %v253, 0.0
    %v255 = vsel %vm125, %v252, 0.0
    %256 = vst [vmem:[#allocation2 + $0x10] sm:$0xf] %v254
    %257 = vst [vmem:[#allocation2 + $0x18] sm:$0xf] %v255
    %258 = vrot.lane.b32.xlu0 %v244, 16
    %v259 = vpop.permute.xlu0 %258
    %260 = vrot.lane.b32.xlu0 %v246, 16
    %v261 = vpop.permute.xlu0 %260
    %v262 = vsel %vm134, %v259, %v261
    %v263 = vsel %vm134, %v261, %v259
    %v264 = vsel %vm139, %v263, 0.0
    %v265 = vsel %vm140, %v262, 0.0
    %266 = vst [vmem:[#allocation2 + $0x30] sm:$0xf] %v264
    %267 = vst [vmem:[#allocation2 + $0x38] sm:$0xf] %v265
    %268 = vrot.lane.b32.xlu0 %v244, 15
    %v269 = vpop.permute.xlu0 %268
    %270 = vrot.lane.b32.xlu0 %v246, 15
    %v271 = vpop.permute.xlu0 %270
    %v272 = vsel %vm149, %v269, %v271
    %v273 = vsel %vm149, %v271, %v269
    %v274 = vsel %vm156, %v273, 0.0
    %v275 = vsel %vm157, %v272, 0.0
    %276 = vst [vmem:[#allocation2 + $0x50] sm:$0xf] %v274
    %277 = vst [vmem:[#allocation2 + $0x58] sm:$0xf] %v275
    %278 = vrot.lane.b32.xlu0 %v244, 1
    %v279 = vpop.permute.xlu0 %278
    %280 = vrot.lane.b32.xlu0 %v246, 1
    %v281 = vpop.permute.xlu0 %280
    %v282 = vsel %vm166, %v279, %v281
    %v283 = vsel %vm166, %v281, %v279
    %v284 = vsel %vm171, %v283, 0.0
    %v285 = vsel %vm172, %v282, 0.0
    %286 = vst [vmem:[#allocation2 + $0x70] sm:$0xf] %v284
    %287 = vst [vmem:[#allocation2 + $0x78] sm:$0xf] %v285
    %288 = vst [vmem:[#allocation2 + $0x90] sm:$0xf] %v244
    %289 = vst [vmem:[#allocation2 + $0x98] sm:$0xf] %v246
    %290 = vrot.lane.b32.xlu0 %v244, 127
    %v291 = vpop.permute.xlu0 %290
    %292 = vrot.lane.b32.xlu0 %v246, 127
    %v293 = vpop.permute.xlu0 %292
    %v294 = vsel %vm183, %v291, %v293
    %v295 = vsel %vm183, %v293, %v291
    %v296 = vsel %vm188, %v294, 0.0
    %v297 = vsel %vm189, %v295, 0.0
    %298 = vst [vmem:[#allocation2 + $0xb0] sm:$0xf] %v296
    %299 = vst [vmem:[#allocation2 + $0xb8] sm:$0xf] %v297
    %300 = vrot.lane.b32.xlu0 %v244, 113
    %v301 = vpop.permute.xlu0 %300
    %302 = vrot.lane.b32.xlu0 %v246, 113
    %v303 = vpop.permute.xlu0 %302
    %v304 = vsel %vm198, %v301, %v303
    %v305 = vsel %vm198, %v303, %v301
    %v306 = vsel %vm205, %v304, 0.0
    %v307 = vsel %vm206, %v305, 0.0
    %308 = vst [vmem:[#allocation2 + $0xd0] sm:$0xf] %v306
    %309 = vst [vmem:[#allocation2 + $0xd8] sm:$0xf] %v307
    %310 = vrot.lane.b32.xlu0 %v244, 112
    %v311 = vpop.permute.xlu0 %310
    %312 = vrot.lane.b32.xlu0 %v246, 112
    %v313 = vpop.permute.xlu0 %312
    %v314 = vsel %vm215, %v311, %v313
    %v315 = vsel %vm215, %v313, %v311
    %v316 = vsel %vm220, %v314, 0.0
    %v317 = vsel %vm221, %v315, 0.0
    %318 = vst [vmem:[#allocation2 + $0xf0] sm:$0xf] %v316
    %319 = vst [vmem:[#allocation2 + $0xf8] sm:$0xf] %v317
    %320 = vrot.lane.b32.xlu0 %v244, 111
    %v321 = vpop.permute.xlu0 %320
    %322 = vrot.lane.b32.xlu0 %v246, 111
    %v323 = vpop.permute.xlu0 %322
    %v324 = vsel %vm230, %v321, %v323
    %v325 = vsel %vm230, %v323, %v321
    %v326 = vsel %vm237, %v324, 0.0
    %v327 = vsel %vm238, %v325, 0.0
    %328 = vst [vmem:[#allocation2 + $0x110] sm:$0xf] %v326
    %329 = vst [vmem:[#allocation2 + $0x118] sm:$0xf] %v327
    %v330 = vld [vmem:[#allocation6] sm:$0xff]
    %v331 = vld [vmem:[#allocation2] sm:$0xff]
    %v332 = vld [vmem:[#allocation2 + $0x8] sm:$0xff]
    %v333 = vld [vmem:[#allocation2 + $0x10] sm:$0xff]
    %v334 = vld [vmem:[#allocation2 + $0x18] sm:$0xff]
    %v335 = vld [vmem:[#allocation2 + $0x20] sm:$0xff]
    %v336 = vld [vmem:[#allocation2 + $0x28] sm:$0xff]
    %v337 = vld [vmem:[#allocation2 + $0x30] sm:$0xff]
    %v338 = vld [vmem:[#allocation2 + $0x38] sm:$0xff]
    %v339 = vld [vmem:[#allocation2 + $0x40] sm:$0xff]
    %v340 = vld [vmem:[#allocation2 + $0x48] sm:$0xff]
    %v341 = vld [vmem:[#allocation2 + $0x50] sm:$0xff]
    %v342 = vld [vmem:[#allocation2 + $0x58] sm:$0xff]
    %v343 = vld [vmem:[#allocation2 + $0x60] sm:$0xff]
    %v344 = vld [vmem:[#allocation2 + $0x68] sm:$0xff]
    %v345 = vld [vmem:[#allocation2 + $0x70] sm:$0xff]
    %v346 = vld [vmem:[#allocation2 + $0x78] sm:$0xff]
    %v347 = vld [vmem:[#allocation2 + $0x80] sm:$0xff]
    %v348 = vld [vmem:[#allocation2 + $0x88] sm:$0xff]
    %v349 = vld [vmem:[#allocation2 + $0x90] sm:$0xff]
    %v350 = vld [vmem:[#allocation2 + $0x98] sm:$0xff]
    %v351 = vld [vmem:[#allocation2 + $0xa0] sm:$0xff]
    %v352 = vld [vmem:[#allocation2 + $0xa8] sm:$0xff]
    %v353 = vld [vmem:[#allocation2 + $0xb0] sm:$0xff]
    %v354 = vld [vmem:[#allocation2 + $0xb8] sm:$0xff]
    %v355 = vld [vmem:[#allocation2 + $0xc0] sm:$0xff]
    %v356 = vld [vmem:[#allocation2 + $0xc8] sm:$0xff]
    %v357 = vld [vmem:[#allocation2 + $0xd0] sm:$0xff]
    %v358 = vld [vmem:[#allocation2 + $0xd8] sm:$0xff]
    %v359 = vld [vmem:[#allocation2 + $0xe0] sm:$0xff]
    %v360 = vld [vmem:[#allocation2 + $0xe8] sm:$0xff]
    %v361 = vld [vmem:[#allocation2 + $0xf0] sm:$0xff]
    %v362 = vld [vmem:[#allocation2 + $0xf8] sm:$0xff]
    %v363 = vld [vmem:[#allocation2 + $0x100] sm:$0xff]
    %v364 = vld [vmem:[#allocation2 + $0x108] sm:$0xff]
    %v365 = vld [vmem:[#allocation2 + $0x110] sm:$0xff]
    %v366 = vld [vmem:[#allocation2 + $0x118] sm:$0xff]
    %vm367 = vcmask 588800
    %v369 = vsel %vm367, %v330, 0
    %371 = vmatprep.subr.mxu0 %v332
    %372 = vmatpush1.msra.mxu0 %v331
    %373 = vmatprep.subr.mxu0 %v336
    %374 = vmatpush1.msra.mxu0 %v335
    %375 = vmatprep.subr.mxu0 %v340
    %376 = vmatpush1.msra.mxu0 %v339
    %377 = vmatprep.subr.mxu0 %v344
    %378 = vmatpush1.msra.mxu0 %v343
    %379 = vmatprep.subr.mxu0 %v348
    %380 = vmatpush1.msra.mxu0 %v347
    %381 = vmatprep.subr.mxu0 %v352
    %382 = vmatpush1.msra.mxu0 %v351
    %383 = vmatprep.subr.mxu0 %v356
    %384 = vmatpush1.msra.mxu0 %v355
    %385 = vmatprep.subr.mxu0 %v360
    %386 = vmatpush1.msra.mxu0 %v359
    %387 = vmatprep.subr.mxu0 %v364
    %388 = vmatpush1.msra.mxu0 %v363
    %389 = vmatprep.subr.mxu0 0.0
    %390 = vmatpush1.msra.mxu0 0.0
    %391 = vmatprep.subr.mxu0 0.0
    %392 = vmatpush1.msra.mxu0 0.0
    %393 = vmatprep.subr.mxu0 0.0
    %394 = vmatpush1.msra.mxu0 0.0
    %395 = vmatprep.subr.mxu0 0.0
    %396 = vmatpush1.msra.mxu0 0.0
    %397 = vmatprep.subr.mxu0 0.0
    %398 = vmatpush1.msra.mxu0 0.0
    %399 = vmatprep.subr.mxu0 0.0
    %400 = vmatpush1.msra.mxu0 0.0
    %401 = vmatprep.subr.mxu0 0.0
    %402 = vmatpush1.msra.mxu0 0.0
    %403 = vmatprep.subr.mxu0 0.0
    %404 = vmatpush1.msra.mxu0 0.0
    %405 = vmatprep.subr.mxu0 0.0
    %406 = vmatpush1.msra.mxu0 0.0
    %407 = vmatprep.subr.mxu0 0.0
    %408 = vmatpush1.msra.mxu0 0.0
    %409 = vmatprep.subr.mxu0 0.0
    %410 = vmatpush1.msra.mxu0 0.0
    %411 = vmatprep.subr.mxu0 0.0
    %412 = vmatpush1.msra.mxu0 0.0
    %413 = vmatprep.subr.mxu0 0.0
    %414 = vmatpush1.msra.mxu0 0.0
    %415 = vmatprep.subr.mxu0 0.0
    %416 = vmatpush1.msra.mxu0 0.0
    %417 = vmatprep.subr.mxu0 0.0
    %418 = vmatpush1.msra.mxu0 0.0
    %419 = vmatprep.subr.mxu0 0.0
    %420 = vmatpush1.msra.mxu0 0.0
    %421 = vmatprep.subr.mxu0 0.0
    %422 = vmatpush1.msra.mxu0 0.0
    %423 = vmatprep.subr.mxu0 0.0
    %424 = vmatpush1.msra.mxu0 0.0
    %425 = vmatprep.subr.mxu0 0.0
    %426 = vmatpush1.msra.mxu0 0.0
    %427 = vmatprep.subr.mxu0 0.0
    %428 = vmatpush1.msra.mxu0 0.0
    %429 = vmatprep.subr.mxu0 0.0
    %430 = vmatpush1.msra.mxu0 0.0
    %431 = vmatprep.subr.mxu0 0.0
    %432 = vmatpush1.msra.mxu0 0.0
    %433 = vmatprep.subr.mxu0 0.0
    %434 = vmatpush1.msra.mxu0 0.0
    %435 = vmatprep.mubr.f32.mxu0 0.0
    %436 = vmatmul.mubr.f32.gmra.mrb[0].mxu0 %v369
    %v437 = vpop.f32.mrb[0].mxu0
    %v438 = vadd.f32 0.0, %v437
    %v439 = vpop.f32.mrb[0].mxu0
    %v440 = vadd.f32 0.0, %v439
    %441 = vdwg.mxu0
    %442 = vmatprep.subr.mxu0 %v334
    %443 = vmatpush1.msra.mxu0 %v333
    %444 = vmatprep.subr.mxu0 %v338
    %445 = vmatpush1.msra.mxu0 %v337
    %446 = vmatprep.subr.mxu0 %v342
    %447 = vmatpush1.msra.mxu0 %v341
    %448 = vmatprep.subr.mxu0 %v346
    %449 = vmatpush1.msra.mxu0 %v345
    %450 = vmatprep.subr.mxu0 %v350
    %451 = vmatpush1.msra.mxu0 %v349
    %452 = vmatprep.subr.mxu0 %v354
    %453 = vmatpush1.msra.mxu0 %v353
    %454 = vmatprep.subr.mxu0 %v358
    %455 = vmatpush1.msra.mxu0 %v357
    %456 = vmatprep.subr.mxu0 %v362
    %457 = vmatpush1.msra.mxu0 %v361
    %458 = vmatprep.subr.mxu0 %v366
    %459 = vmatpush1.msra.mxu0 %v365
    %460 = vmatprep.subr.mxu0 0.0
    %461 = vmatpush1.msra.mxu0 0.0
    %462 = vmatprep.subr.mxu0 0.0
    %463 = vmatpush1.msra.mxu0 0.0
    %464 = vmatprep.subr.mxu0 0.0
    %465 = vmatpush1.msra.mxu0 0.0
    %466 = vmatprep.subr.mxu0 0.0
    %467 = vmatpush1.msra.mxu0 0.0
    %468 = vmatprep.subr.mxu0 0.0
    %469 = vmatpush1.msra.mxu0 0.0
    %470 = vmatprep.subr.mxu0 0.0
    %471 = vmatpush1.msra.mxu0 0.0
    %472 = vmatprep.subr.mxu0 0.0
    %473 = vmatpush1.msra.mxu0 0.0
    %474 = vmatprep.subr.mxu0 0.0
    %475 = vmatpush1.msra.mxu0 0.0
    %476 = vmatprep.subr.mxu0 0.0
    %477 = vmatpush1.msra.mxu0 0.0
    %478 = vmatprep.subr.mxu0 0.0
    %479 = vmatpush1.msra.mxu0 0.0
    %480 = vmatprep.subr.mxu0 0.0
    %481 = vmatpush1.msra.mxu0 0.0
    %482 = vmatprep.subr.mxu0 0.0
    %483 = vmatpush1.msra.mxu0 0.0
    %484 = vmatprep.subr.mxu0 0.0
    %485 = vmatpush1.msra.mxu0 0.0
    %486 = vmatprep.subr.mxu0 0.0
    %487 = vmatpush1.msra.mxu0 0.0
    %488 = vmatprep.subr.mxu0 0.0
    %489 = vmatpush1.msra.mxu0 0.0
    %490 = vmatprep.subr.mxu0 0.0
    %491 = vmatpush1.msra.mxu0 0.0
    %492 = vmatprep.subr.mxu0 0.0
    %493 = vmatpush1.msra.mxu0 0.0
    %494 = vmatprep.subr.mxu0 0.0
    %495 = vmatpush1.msra.mxu0 0.0
    %496 = vmatprep.subr.mxu0 0.0
    %497 = vmatpush1.msra.mxu0 0.0
    %498 = vmatprep.subr.mxu0 0.0
    %499 = vmatpush1.msra.mxu0 0.0
    %500 = vmatprep.subr.mxu0 0.0
    %501 = vmatpush1.msra.mxu0 0.0
    %502 = vmatprep.subr.mxu0 0.0
    %503 = vmatpush1.msra.mxu0 0.0
    %504 = vmatprep.subr.mxu0 0.0
    %505 = vmatpush1.msra.mxu0 0.0
    %506 = vmatprep.mubr.f32.mxu0 0.0
    %507 = vmatmul.mubr.f32.gmra.mrb[0].mxu0 %v369
    %v508 = vpop.f32.mrb[0].mxu0
    %v509 = vadd.f32 0.0, %v508
    %v510 = vpop.f32.mrb[0].mxu0
    %v511 = vadd.f32 0.0, %v510
    %512 = vdwg.mxu0
    %513 = vst [vmem:[#allocation8] sm:$0xff] %v438
    %514 = vst [vmem:[#allocation8 + $0x8] sm:$0xff] %v440
    %s515 = scalar_lea.vmem [#allocation8], 16
    %516 = vst [vmem:[%s515] sm:$0xff] %v509
    %517 = vst [vmem:[%s515 + $0x8] sm:$0xff] %v511
    // Predicated region
    $region18: #{tpu_custom_call.1} parent=1 // pred_check
      _
    $region19: #{tpu_custom_call.1} parent=1 // pred_check_branch
      %519 = sbr.rel (0) target = $region21
    $region20: #{tpu_custom_call.1} parent=1 // pred_region
      %s521 = ssub.s32 512, 512
      %522 = vsyncadd [#allocation5], %s521
      %s523 = sshll.u32 [#allocation8], 4
      %s524 = int_to_ptr.vmem [resolvable:$true] %s523
      %529 = dma.vmem_to_hbm [thread:$0]  %s524, 512, %s2, [#allocation5], 256, 256, 16
    $region21: #{tpu_custom_call.1} parent=1 // pred_fallthru
      _
    // Predicated region
    $region22: #{tpu_custom_call.1} parent=1 // pred_check
      _
    $region23: #{tpu_custom_call.1} parent=1 // pred_check_branch
      %531 = sbr.rel (0) target = $region25
    $region24: #{tpu_custom_call.1} parent=1 // pred_region
      %532 = dma.done [#allocation5], 512
    $region25: #{tpu_custom_call.1} parent=1 // pred_fallthru
      _
    %533 = vsyncpa [#allocation4], 1
    %534 = vsyncpa [#allocation7], 1
    %535 = vsyncpa [#allocation5], 1

</llo_original>
